<compile_context>
chip_gen: v5e
topology: v5e:2x2
jax: 0.10.0
libtpu: 0.0.40
codegen_flags: <defaults>
</compile_context>

<pallas_src>
import jax
import jax.numpy as jnp
from jax.experimental import pallas as pl
from jax.experimental.pallas import tpu as pltpu


def _round_up(x, m):
    return ((x + m - 1) // m) * m


def _sage_kernel_lin_first(adj_ref, xsrc_ref, xdst_ref, wn_ref, ws_ref, b_ref,
                           out_ref, acc_ref):
    # lin_before_mp (in_feats > out_feats): h_neigh = adj @ (feat_src @ Wn^T),
    # accumulated over src (K) tiles in f32.
    k = pl.program_id(1)

    @pl.when(k == 0)
    def _init():
        # Self term + bias folded into the accumulator init (once per dst tile).
        acc_ref[...] = (
            jnp.dot(xdst_ref[...], ws_ref[...], preferred_element_type=jnp.float32)
            + b_ref[...].astype(jnp.float32))

    h_src = jnp.dot(xsrc_ref[...], wn_ref[...], preferred_element_type=jnp.float32)
    acc_ref[...] += jnp.dot(adj_ref[...], h_src.astype(adj_ref.dtype),
                            preferred_element_type=jnp.float32)

    @pl.when(k == pl.num_programs(1) - 1)
    def _finalize():
        out_ref[...] = acc_ref[...].astype(out_ref.dtype)


def _sage_kernel_agg_first(adj_ref, xsrc_ref, xdst_ref, wn_ref, ws_ref, b_ref,
                           out_ref, neigh_ref, acc_ref):
    # in_feats <= out_feats: mean-aggregate raw features over K tiles, apply fc_neigh once
    # at the last K step.
    k = pl.program_id(1)

    @pl.when(k == 0)
    def _init():
        neigh_ref[...] = jnp.zeros_like(neigh_ref)
        acc_ref[...] = (
            jnp.dot(xdst_ref[...], ws_ref[...], preferred_element_type=jnp.float32)
            + b_ref[...].astype(jnp.float32))

    neigh_ref[...] += jnp.dot(adj_ref[...], xsrc_ref[...],
                              preferred_element_type=jnp.float32)

    @pl.when(k == pl.num_programs(1) - 1)
    def _finalize():
        h_neigh = jnp.dot(neigh_ref[...].astype(wn_ref.dtype), wn_ref[...],
                          preferred_element_type=jnp.float32)
        out_ref[...] = (acc_ref[...] + h_neigh).astype(out_ref.dtype)


def fusion_sage_conv(adj_norm, feat, w_neigh, w_self, bias, in_feats, out_feats,
                     *, compute_dtype=jnp.float32, tm_max=256, tk_max=512):
    """Pallas TPU implementation of FusionSAGEConv.forward (mean aggregator,
    feat_drop=0, activation=None, norm=None, non-block graph)."""
    out_dtype = feat.dtype
    n_dst, n_src = adj_norm.shape
    lin_before_mp = in_feats > out_feats  # same decision as the PyTorch module

    # Lane-dense padding of the feature dims (multiples of 128).
    in_pad = _round_up(in_feats, 128)
    out_pad = _round_up(out_feats, 128)

    # Tile sizes: dst rows in TM tiles (parallel axis), src cols in TK tiles (reduction axis).
    tm = min(tm_max, _round_up(n_dst, 8))
    tk = min(tk_max, _round_up(n_src, 128))
    n_dst_p = _round_up(n_dst, tm)
    n_src_p = _round_up(n_src, tk)

    cdt = compute_dtype
    bpe = jnp.dtype(cdt).itemsize

    # One-time wrapper-side padding / cast / weight transpose (layout plumbing).
    adj_p = jnp.zeros((n_dst_p, n_src_p), cdt).at[:n_dst, :n_src].set(adj_norm.astype(cdt))
    feat_p = jnp.zeros((n_src_p, in_pad), cdt).at[:feat.shape[0], :in_feats].set(feat.astype(cdt))
    wn_t = jnp.zeros((in_pad, out_pad), cdt).at[:in_feats, :out_feats].set(w_neigh.T.astype(cdt))
    ws_t = jnp.zeros((in_pad, out_pad), cdt).at[:in_feats, :out_feats].set(w_self.T.astype(cdt))
    bias_p = jnp.zeros((1, out_pad), jnp.float32).at[0, :out_feats].set(
        bias.reshape(-1).astype(jnp.float32))

    grid = (n_dst_p // tm, n_src_p // tk)

    in_specs = [
        pl.BlockSpec((tm, tk), lambda i, k: (i, k)),            # adj tile
        pl.BlockSpec((tk, in_pad), lambda i, k: (k, 0)),        # src-feature tile (K rows)
        pl.BlockSpec((tm, in_pad), lambda i, k: (i, 0)),        # dst-feature tile (self term)
        pl.BlockSpec((in_pad, out_pad), lambda i, k: (0, 0)),   # w_neigh^T (untiled)
        pl.BlockSpec((in_pad, out_pad), lambda i, k: (0, 0)),   # w_self^T  (untiled)
        pl.BlockSpec((1, out_pad), lambda i, k: (0, 0)),        # bias
    ]
    out_specs = pl.BlockSpec((tm, out_pad), lambda i, k: (i, 0))  # resident across K

    if lin_before_mp:
        kernel = _sage_kernel_lin_first
        scratch = [pltpu.VMEM((tm, out_pad), jnp.float32)]
        flops = (2 * grid[0] * n_src_p * in_pad * out_pad      # fc_neigh (per dst tile)
                 + 2 * n_dst_p * n_src_p * out_pad             # aggregation
                 + 2 * n_dst_p * in_pad * out_pad)             # fc_self
    else:
        kernel = _sage_kernel_agg_first
        scratch = [pltpu.VMEM((tm, in_pad), jnp.float32),
                   pltpu.VMEM((tm, out_pad), jnp.float32)]
        flops = (2 * n_dst_p * n_src_p * in_pad                # aggregation
                 + 2 * n_dst_p * in_pad * out_pad              # fc_neigh
                 + 2 * n_dst_p * in_pad * out_pad)             # fc_self

    bytes_accessed = ((adj_p.size + feat_p.size * (grid[0] + 1)
                       + wn_t.size + ws_t.size) * bpe
                      + bias_p.size * 4
                      + n_dst_p * out_pad * jnp.dtype(out_dtype).itemsize)
    cost = pl.CostEstimate(flops=int(flops), transcendentals=0,
                           bytes_accessed=int(bytes_accessed))

    out_padded = pl.pallas_call(
        kernel,
        out_shape=jax.ShapeDtypeStruct((n_dst_p, out_pad), out_dtype),
        grid_spec=pltpu.PrefetchScalarGridSpec(
            num_scalar_prefetch=0,
            grid=grid,
            in_specs=in_specs,
            out_specs=out_specs,
            scratch_shapes=scratch),
        compiler_params=pltpu.CompilerParams(
            dimension_semantics=("parallel", "arbitrary"),
            vmem_limit_bytes=32 * 1024 * 1024),
        cost_estimate=cost,
    )(adj_p, feat_p, feat_p, wn_t, ws_t, bias_p)

    return out_padded[:n_dst, :out_feats]


def _reference(adj_norm, feat, w_neigh, w_self, bias, in_feats, out_feats):
    # Pure-JAX reference of the same forward semantics.
    if in_feats > out_feats:
        h_neigh = adj_norm @ (feat @ w_neigh.T)
    else:
        h_neigh = (adj_norm @ feat) @ w_neigh.T
    return feat @ w_self.T + bias.reshape(1, -1) + h_neigh


def _xavier_uniform(key, shape, gain):
    # nn.init.xavier_uniform_ on an [out, in] Linear weight
    fan_out, fan_in = shape
    bound = gain * jnp.sqrt(6.0 / (fan_in + fan_out))
    return jax.random.uniform(key, shape, jnp.float32, -bound, bound)


if __name__ == "__main__":
    key = jax.random.PRNGKey(0)

    def make_inputs(k, num_nodes, in_feats, out_feats):
        k_feat, k_adj, k_wn, k_ws, k_b = jax.random.split(k, 5)
        feat = jax.random.normal(k_feat, (num_nodes, in_feats), jnp.float32)
        # Random graph (dense adjacency) -> row-normalized mean-aggregation matrix.
        adj = (jax.random.uniform(k_adj, (num_nodes, num_nodes)) < 0.3).astype(jnp.float32)
        deg = jnp.sum(adj, axis=1, keepdims=True)
        adj_norm = jnp.where(deg > 0, adj / jnp.maximum(deg, 1.0), 0.0)
        # reset_parameters(): xavier_uniform with relu gain; default Linear bias init.
        gain = jnp.sqrt(2.0)
        w_neigh = _xavier_uniform(k_wn, (out_feats, in_feats), gain)
        w_self = _xavier_uniform(k_ws, (out_feats, in_feats), gain)
        b_bound = 1.0 / jnp.sqrt(in_feats)
        bias = jax.random.uniform(k_b, (out_feats,), jnp.float32, -b_bound, b_bound)
        return adj_norm, feat, w_neigh, w_self, bias

    num_nodes = 160
    k1, k2 = jax.random.split(key)

    # Case 1: in_feats > out_feats -> lin_before_mp=True branch (multi-tile grid: 3x2).
    in_f, out_f = 32, 16
    args1 = make_inputs(k1, num_nodes, in_f, out_f)
    out1 = jax.block_until_ready(
        fusion_sage_conv(*args1, in_f, out_f, tm_max=64, tk_max=128))
    ref1 = _reference(*args1, in_f, out_f)
    assert out1.shape == (num_nodes, out_f)
    assert jnp.allclose(out1, ref1, atol=1e-4, rtol=1e-4), "f32 lin-before-mp mismatch"

    # Case 2: in_feats <= out_feats -> aggregate-then-linear branch.
    in_f2, out_f2 = 16, 24
    args2 = make_inputs(k2, num_nodes, in_f2, out_f2)
    out2 = jax.block_until_ready(
        fusion_sage_conv(*args2, in_f2, out_f2, tm_max=64, tk_max=128))
    ref2 = _reference(*args2, in_f2, out_f2)
    assert out2.shape == (num_nodes, out_f2)
    assert jnp.allclose(out2, ref2, atol=1e-4, rtol=1e-4), "f32 agg-first mismatch"

    # Case 3: bf16 inputs / f32 accumulation (v6e / v7x MXU fast path).
    out3 = jax.block_until_ready(
        fusion_sage_conv(*args1, in_f, out_f, compute_dtype=jnp.bfloat16,
                         tm_max=64, tk_max=128))
    rel_err = jnp.max(jnp.abs(out3 - ref1)) / (jnp.max(jnp.abs(ref1)) + 1e-6)
    assert rel_err < 5e-2, f"bf16 path relative error too high: {rel_err}"

    print("KERNEL_OK")
</pallas_src>

<mosaic_0001>
module attributes {stable_mosaic.version = 11 : i64} {
  func.func @_sage_kernel_lin_first(%arg0: i32, %arg1: i32, %arg2: memref<64x128xf32, #tpu.memory_space<vmem>>, %arg3: memref<128x128xf32, #tpu.memory_space<vmem>>, %arg4: memref<64x128xf32, #tpu.memory_space<vmem>>, %arg5: memref<128x128xf32, #tpu.memory_space<vmem>>, %arg6: memref<128x128xf32, #tpu.memory_space<vmem>>, %arg7: memref<1x128xf32, #tpu.memory_space<vmem>>, %arg8: memref<64x128xf32, #tpu.memory_space<vmem>>, %arg9: memref<64x128xf32, #tpu.memory_space<vmem>>) attributes {dimension_semantics = [#tpu.dimension_semantics<parallel>, #tpu.dimension_semantics<arbitrary>], iteration_bounds = array<i64: 3, 2>, scalar_prefetch = 0 : i64, scratch_operands = 1 : i64, tpu.core_type = #tpu.core_type<tc>, window_params = [{transform_indices = @transform_0, window_bounds = array<i64: 64, 128>}, {transform_indices = @transform_1, window_bounds = array<i64: 128, 128>}, {transform_indices = @transform_2, window_bounds = array<i64: 64, 128>}, {pipeline_mode = #tpu.pipeline_mode<synchronous>, transform_indices = @transform_3, window_bounds = array<i64: 128, 128>}, {pipeline_mode = #tpu.pipeline_mode<synchronous>, transform_indices = @transform_4, window_bounds = array<i64: 128, 128>}, {pipeline_mode = #tpu.pipeline_mode<synchronous>, transform_indices = @transform_5, window_bounds = array<i64: 1, 128>}, {transform_indices = @transform_6, window_bounds = array<i64: 64, 128>}]} {
    %c0_i32 = arith.constant 0 : i32
    %0 = arith.cmpi eq, %arg1, %c0_i32 : i32
    %1 = arith.extui %0 : i1 to i32
    %c0_i32_0 = arith.constant 0 : i32
    %2 = arith.cmpi ne, %1, %c0_i32_0 : i32
    scf.if %2 {
      %c0_12 = arith.constant 0 : index
      %c0_13 = arith.constant 0 : index
      %14 = vector.load %arg4[%c0_12, %c0_13] : memref<64x128xf32, #tpu.memory_space<vmem>>, vector<64x128xf32>
      %c0_14 = arith.constant 0 : index
      %c0_15 = arith.constant 0 : index
      %15 = vector.load %arg6[%c0_14, %c0_15] : memref<128x128xf32, #tpu.memory_space<vmem>>, vector<128x128xf32>
      %cst_16 = arith.constant dense<0.000000e+00> : vector<64x128xf32>
      %16 = tpu.matmul %14, %15, %cst_16 {dimension_numbers = #tpu.dot_dimension_numbers<[1], [0], [0], [1], [0, 0, 1, 1], [], []>} : vector<64x128xf32>, vector<128x128xf32>, vector<64x128xf32> -> vector<64x128xf32>
      %c0_17 = arith.constant 0 : index
      %c0_18 = arith.constant 0 : index
      %17 = vector.load %arg7[%c0_17, %c0_18] : memref<1x128xf32, #tpu.memory_space<vmem>>, vector<1x128xf32>
      %18 = vector.broadcast %17 : vector<1x128xf32> to vector<64x128xf32>
      %19 = arith.addf %16, %18 : vector<64x128xf32>
      %c0_19 = arith.constant 0 : index
      %c0_20 = arith.constant 0 : index
      %20 = vector.load %arg9[%c0_19, %c0_20] : memref<64x128xf32, #tpu.memory_space<vmem>>, vector<64x128xf32>
      tpu.vector_store %arg9[%c0_19, %c0_20], %19 {strides = array<i32>} : memref<64x128xf32, #tpu.memory_space<vmem>>, vector<64x128xf32>,
    } else {
    }
    %c0 = arith.constant 0 : index
    %c0_1 = arith.constant 0 : index
    %3 = vector.load %arg3[%c0, %c0_1] : memref<128x128xf32, #tpu.memory_space<vmem>>, vector<128x128xf32>
    %c0_2 = arith.constant 0 : index
    %c0_3 = arith.constant 0 : index
    %4 = vector.load %arg5[%c0_2, %c0_3] : memref<128x128xf32, #tpu.memory_space<vmem>>, vector<128x128xf32>
    %cst = arith.constant dense<0.000000e+00> : vector<128x128xf32>
    %5 = tpu.matmul %3, %4, %cst {dimension_numbers = #tpu.dot_dimension_numbers<[1], [0], [0], [1], [0, 0, 1, 1], [], []>} : vector<128x128xf32>, vector<128x128xf32>, vector<128x128xf32> -> vector<128x128xf32>
    %c0_4 = arith.constant 0 : index
    %c0_5 = arith.constant 0 : index
    %6 = vector.load %arg9[%c0_4, %c0_5] : memref<64x128xf32, #tpu.memory_space<vmem>>, vector<64x128xf32>
    %c0_6 = arith.constant 0 : index
    %c0_7 = arith.constant 0 : index
    %7 = vector.load %arg2[%c0_6, %c0_7] : memref<64x128xf32, #tpu.memory_space<vmem>>, vector<64x128xf32>
    %cst_8 = arith.constant dense<0.000000e+00> : vector<64x128xf32>
    %8 = tpu.matmul %7, %5, %cst_8 {dimension_numbers = #tpu.dot_dimension_numbers<[1], [0], [0], [1], [0, 0, 1, 1], [], []>} : vector<64x128xf32>, vector<128x128xf32>, vector<64x128xf32> -> vector<64x128xf32>
    %9 = arith.addf %6, %8 : vector<64x128xf32>
    %c0_9 = arith.constant 0 : index
    %c0_10 = arith.constant 0 : index
    %10 = vector.load %arg9[%c0_9, %c0_10] : memref<64x128xf32, #tpu.memory_space<vmem>>, vector<64x128xf32>
    tpu.vector_store %arg9[%c0_9, %c0_10], %9 {strides = array<i32>} : memref<64x128xf32, #tpu.memory_space<vmem>>, vector<64x128xf32>,
    %c1_i32 = arith.constant 1 : i32
    %11 = arith.cmpi eq, %arg1, %c1_i32 : i32
    %12 = arith.extui %11 : i1 to i32
    %c0_i32_11 = arith.constant 0 : i32
    %13 = arith.cmpi ne, %12, %c0_i32_11 : i32
    scf.if %13 {
      %c0_12 = arith.constant 0 : index
      %c0_13 = arith.constant 0 : index
      %14 = vector.load %arg9[%c0_12, %c0_13] : memref<64x128xf32, #tpu.memory_space<vmem>>, vector<64x128xf32>
      %c0_14 = arith.constant 0 : index
      %c0_15 = arith.constant 0 : index
      %15 = vector.load %arg8[%c0_14, %c0_15] : memref<64x128xf32, #tpu.memory_space<vmem>>, vector<64x128xf32>
      tpu.vector_store %arg8[%c0_14, %c0_15], %14 {strides = array<i32>} : memref<64x128xf32, #tpu.memory_space<vmem>>, vector<64x128xf32>,
    } else {
    }
    return
  }
  func.func @transform_0(%arg0: i32, %arg1: i32) -> (i32, i32) {
    %c0_i32 = arith.constant 0 : i32
    return %arg0, %arg1 : i32, i32
  }
  func.func @transform_1(%arg0: i32, %arg1: i32) -> (i32, i32) {
    %c0_i32 = arith.constant 0 : i32
    %c0_i32_0 = arith.constant 0 : i32
    return %arg1, %c0_i32 : i32, i32
  }
  func.func @transform_2(%arg0: i32, %arg1: i32) -> (i32, i32) {
    %c0_i32 = arith.constant 0 : i32
    %c0_i32_0 = arith.constant 0 : i32
    return %arg0, %c0_i32 : i32, i32
  }
  func.func @transform_3(%arg0: i32, %arg1: i32) -> (i32, i32) {
    %c0_i32 = arith.constant 0 : i32
    %c0_i32_0 = arith.constant 0 : i32
    %c0_i32_1 = arith.constant 0 : i32
    return %c0_i32, %c0_i32_0 : i32, i32
  }
  func.func @transform_4(%arg0: i32, %arg1: i32) -> (i32, i32) {
    %c0_i32 = arith.constant 0 : i32
    %c0_i32_0 = arith.constant 0 : i32
    %c0_i32_1 = arith.constant 0 : i32
    return %c0_i32, %c0_i32_0 : i32, i32
  }
  func.func @transform_5(%arg0: i32, %arg1: i32) -> (i32, i32) {
    %c0_i32 = arith.constant 0 : i32
    %c0_i32_0 = arith.constant 0 : i32
    %c0_i32_1 = arith.constant 0 : i32
    return %c0_i32, %c0_i32_0 : i32, i32
  }
  func.func @transform_6(%arg0: i32, %arg1: i32) -> (i32, i32) {
    %c0_i32 = arith.constant 0 : i32
    %c0_i32_0 = arith.constant 0 : i32
    return %arg0, %c0_i32 : i32, i32
  }
}

</mosaic_0001>

<llo_original>
// kernel: tpu_custom_call.1
$region0: #{tpu_custom_call.1}
  #allocation0 [shape = 'u32[]', space=smem, size = 0x4, offset = 0x4, fixed_abs, tag = 'smem constant byte address 0x4 - core index']
  #allocation1 [shape = 'u32[72,128]{1,0:T(1,128)}', space=vmem, size = 0x9000, scoped, tag = 'internal scratch']
  #allocation2 [shape = 'f32[64,128]{1,0:T(8,128)}', space=vmem, size = 0x8000, scoped, tag = 'scratch operand']
  %s0 = inlined_call_operand.hbm [shape: f32[192,256], index: 0, kind: input, shape index: {}]
  %s1 = inlined_call_operand.hbm [shape: f32[256,128], index: 1, kind: input, shape index: {}]
  %s2 = inlined_call_operand.hbm [shape: f32[256,128], index: 2, kind: input, shape index: {}]
  %s3 = inlined_call_operand.hbm [shape: f32[128,128], index: 3, kind: input, shape index: {}]
  %s4 = inlined_call_operand.hbm [shape: f32[128,128], index: 4, kind: input, shape index: {}]
  %s5 = inlined_call_operand.vmem [shape: f32[1,128], index: 5, kind: input, shape index: {}]
  %s6 = inlined_call_operand.hbm [shape: f32[192,128], index: 6, kind: output, shape index: {}]
  %s7 = sld [smem:[#allocation0]]
  $region85: #{tpu_custom_call.1} parent=0
    _
  %s9 = ssub.s32 1, %s7
  %s10 = scalar_select 0, %s9, %s7
  $region1: #{tpu_custom_call.1} parent=0
    #allocation3 [shape = 'u8[65536]{0}', space=vmem, size = 0x10000, scoped, tag = 'input window, operand 0']
    #allocation4 [shape = 's32[2]{0}', space=sflag, size = 0x8, scoped, tag = 'scoped memory for tpu_custom_call.1']
    #allocation5 [shape = 's32[2]{0}', space=sflag, size = 0x8, scoped, tag = 'scoped memory for tpu_custom_call.1']
    #allocation6 [shape = 'u8[131072]{0}', space=vmem, size = 0x20000, scoped, tag = 'input window, operand 1']
    #allocation7 [shape = 's32[2]{0}', space=sflag, size = 0x8, scoped, tag = 'scoped memory for tpu_custom_call.1']
    #allocation8 [shape = 'u8[65536]{0}', space=vmem, size = 0x10000, scoped, tag = 'input window, operand 2']
    #allocation9 [shape = 'u8[65536]{0}', space=vmem, size = 0x10000, scoped, tag = 'input window, operand 3, single buffered']
    #allocation10 [shape = 's32[1]{0}', space=sflag, size = 0x4, scoped, tag = 'scoped memory for tpu_custom_call.1']
    #allocation11 [shape = 'u8[65536]{0}', space=vmem, size = 0x10000, scoped, tag = 'input window, operand 4, single buffered']
    #allocation12 [shape = 'u8[65536]{0}', space=vmem, size = 0x10000, scoped, tag = 'output window, operand 0']
    %11 = vsyncpa [#allocation4], 0
    %s12 = scalar_lea.sflag [#allocation4], 1
    %13 = vsyncpa %s12, 0
    %14 = vsyncpa [#allocation7], 0
    %s15 = scalar_lea.sflag [#allocation7], 1
    %16 = vsyncpa %s15, 0
    %17 = vsyncpa [#allocation10], 0
    %18 = vsyncpa [#allocation5], 0
    %s19 = scalar_lea.sflag [#allocation5], 1
    %20 = vsyncpa %s19, 0
    loop: start=0, step=1, limit=8
    $region2: #{tpu_custom_call.1} parent=1 // loop_pre_header
      _
    $region3: #{tpu_custom_call.1} parent=1 // loop_header
      %s22 = sphi 0, %s26
      %p23 = scmp.ge.s32.totalorder %s22, 8
      %s29 = sphi 0, %s41
      %s30 = sphi 0, %s37
      %s31 = sphi 0, %s29
      %s32 = sphi 0, %s30
      %s33 = sphi 0, %s31
      %s34 = sphi 0, %s32
      %s46 = sphi 0, %s48
      %s49 = sphi 0, %s46
      %s50 = sphi 0, %s49
      %s66 = sphi 0, %s50
      %s72 = sphi 0, %s74
      %s75 = sphi 0, %s72
      %s76 = sphi 0, %s75
      %s92 = sphi 0, %s76
      %s98 = sphi 0, %s100
      %s101 = sphi 0, %s98
      %s102 = sphi 0, %s101
      %s118 = sphi 0, %s102
      %s122 = sphi 0, %s122
      %s124 = sphi 0, %s122
      %s125 = sphi 0, %s124
      %s139 = sphi 0, %s125
      %s143 = sphi 0, %s143
      %s145 = sphi 0, %s143
      %s146 = sphi 0, %s145
      %s160 = sphi 0, %s146
      %s164 = sphi 0, %s164
      %s166 = sphi 0, %s164
      %s167 = sphi 0, %s166
      %s181 = sphi 0, %s167
      %s187 = sphi 0, %s189
      %s190 = sphi 0, %s187
      %s191 = sphi 0, %s190
      %s207 = sphi 0, %s191
    $region4: #{tpu_custom_call.1} parent=1 // loop_header_branch
      %25 = sbr.rel (%p23) target = $region8
    $region5: #{tpu_custom_call.1} parent=1 // loop_body
      %s27 = ssub.s32 %s22, 1
      %s28 = ssub.s32 %s22, 2
      %s35 = sadd.s32 1, %s30
      %p36 = scmp.ge.s32.totalorder %s35, 2
      %s37 = scalar_select %p36, 0, %s35
      %s38 = sadd.s32 1, %s29
      %s39 = scalar_select %p36, %s38, %s29
      %p40 = scmp.ge.s32.totalorder %s39, 3
      %s41 = scalar_select %p40, 0, %s39
      %s42 = ssub.s32 %s29, %s41
      %s43 = ssub.s32 %s30, %s37
      %s44 = sor.u32 %s42, %s43
      %p45 = scmp.eq.s32.totalorder %s44, 0
      %s47 = sadd.s32 %s46, 1
      %s48 = scalar_select %p45, %s46, %s47
      %p51 = pneg %p45
      %p52 = scmp.eq.s32.totalorder %s22, 5
      %p53 = por %p51, %p52
      %p54 = scmp.ne.s32.totalorder %s46, %s49
      %p55 = scmp.eq.s32.totalorder %s22, 0
      %p56 = por %p54, %p55
      %p57 = scmp.ne.s32.totalorder %s46, %s49
      %p58 = scmp.eq.s32.totalorder %s27, 5
      %p59 = por %p57, %p58
      %p60 = scmp.ne.s32.totalorder %s49, %s50
      %p61 = scmp.eq.s32.totalorder %s27, 0
      %p62 = por %p60, %p61
      %p63 = scmp.ne.s32.totalorder %s49, %s50
      %p64 = scmp.eq.s32.totalorder %s28, 5
      %p65 = por %p63, %p64
      %p67 = scmp.ne.s32.totalorder %s50, %s66
      %p68 = scmp.eq.s32.totalorder %s28, 0
      %p69 = por %p67, %p68
      %s70 = ssub.s32 %s30, %s37
      %p71 = scmp.eq.s32.totalorder %s70, 0
      %s73 = sadd.s32 %s72, 1
      %s74 = scalar_select %p71, %s72, %s73
      %p77 = pneg %p71
      %p78 = scmp.eq.s32.totalorder %s22, 5
      %p79 = por %p77, %p78
      %p80 = scmp.ne.s32.totalorder %s72, %s75
      %p81 = scmp.eq.s32.totalorder %s22, 0
      %p82 = por %p80, %p81
      %p83 = scmp.ne.s32.totalorder %s72, %s75
      %p84 = scmp.eq.s32.totalorder %s27, 5
      %p85 = por %p83, %p84
      %p86 = scmp.ne.s32.totalorder %s75, %s76
      %p87 = scmp.eq.s32.totalorder %s27, 0
      %p88 = por %p86, %p87
      %p89 = scmp.ne.s32.totalorder %s75, %s76
      %p90 = scmp.eq.s32.totalorder %s28, 5
      %p91 = por %p89, %p90
      %p93 = scmp.ne.s32.totalorder %s76, %s92
      %p94 = scmp.eq.s32.totalorder %s28, 0
      %p95 = por %p93, %p94
      %s96 = ssub.s32 %s29, %s41
      %p97 = scmp.eq.s32.totalorder %s96, 0
      %s99 = sadd.s32 %s98, 1
      %s100 = scalar_select %p97, %s98, %s99
      %p103 = pneg %p97
      %p104 = scmp.eq.s32.totalorder %s22, 5
      %p105 = por %p103, %p104
      %p106 = scmp.ne.s32.totalorder %s98, %s101
      %p107 = scmp.eq.s32.totalorder %s22, 0
      %p108 = por %p106, %p107
      %p109 = scmp.ne.s32.totalorder %s98, %s101
      %p110 = scmp.eq.s32.totalorder %s27, 5
      %p111 = por %p109, %p110
      %p112 = scmp.ne.s32.totalorder %s101, %s102
      %p113 = scmp.eq.s32.totalorder %s27, 0
      %p114 = por %p112, %p113
      %p115 = scmp.ne.s32.totalorder %s101, %s102
      %p116 = scmp.eq.s32.totalorder %s28, 5
      %p117 = por %p115, %p116
      %p119 = scmp.ne.s32.totalorder %s102, %s118
      %p120 = scmp.eq.s32.totalorder %s28, 0
      %p121 = por %p119, %p120
      %s123 = sadd.s32 %s122, 1
      %p126 = scmp.eq.s32.totalorder %s22, 5
      %p127 = scmp.ne.s32.totalorder %s122, %s124
      %p128 = scmp.eq.s32.totalorder %s22, 0
      %p129 = por %p127, %p128
      %p130 = scmp.ne.s32.totalorder %s122, %s124
      %p131 = scmp.eq.s32.totalorder %s27, 5
      %p132 = por %p130, %p131
      %p133 = scmp.ne.s32.totalorder %s124, %s125
      %p134 = scmp.eq.s32.totalorder %s27, 0
      %p135 = por %p133, %p134
      %p136 = scmp.ne.s32.totalorder %s124, %s125
      %p137 = scmp.eq.s32.totalorder %s28, 5
      %p138 = por %p136, %p137
      %p140 = scmp.ne.s32.totalorder %s125, %s139
      %p141 = scmp.eq.s32.totalorder %s28, 0
      %p142 = por %p140, %p141
      %s144 = sadd.s32 %s143, 1
      %p147 = scmp.eq.s32.totalorder %s22, 5
      %p148 = scmp.ne.s32.totalorder %s143, %s145
      %p149 = scmp.eq.s32.totalorder %s22, 0
      %p150 = por %p148, %p149
      %p151 = scmp.ne.s32.totalorder %s143, %s145
      %p152 = scmp.eq.s32.totalorder %s27, 5
      %p153 = por %p151, %p152
      %p154 = scmp.ne.s32.totalorder %s145, %s146
      %p155 = scmp.eq.s32.totalorder %s27, 0
      %p156 = por %p154, %p155
      %p157 = scmp.ne.s32.totalorder %s145, %s146
      %p158 = scmp.eq.s32.totalorder %s28, 5
      %p159 = por %p157, %p158
      %p161 = scmp.ne.s32.totalorder %s146, %s160
      %p162 = scmp.eq.s32.totalorder %s28, 0
      %p163 = por %p161, %p162
      %s165 = sadd.s32 %s164, 1
      %p168 = scmp.eq.s32.totalorder %s22, 5
      %p169 = scmp.ne.s32.totalorder %s164, %s166
      %p170 = scmp.eq.s32.totalorder %s22, 0
      %p171 = por %p169, %p170
      %p172 = scmp.ne.s32.totalorder %s164, %s166
      %p173 = scmp.eq.s32.totalorder %s27, 5
      %p174 = por %p172, %p173
      %p175 = scmp.ne.s32.totalorder %s166, %s167
      %p176 = scmp.eq.s32.totalorder %s27, 0
      %p177 = por %p175, %p176
      %p178 = scmp.ne.s32.totalorder %s166, %s167
      %p179 = scmp.eq.s32.totalorder %s28, 5
      %p180 = por %p178, %p179
      %p182 = scmp.ne.s32.totalorder %s167, %s181
      %p183 = scmp.eq.s32.totalorder %s28, 0
      %p184 = por %p182, %p183
      %s185 = ssub.s32 %s29, %s41
      %p186 = scmp.eq.s32.totalorder %s185, 0
      %s188 = sadd.s32 %s187, 1
      %s189 = scalar_select %p186, %s187, %s188
      %p192 = pneg %p186
      %p193 = scmp.eq.s32.totalorder %s22, 5
      %p194 = por %p192, %p193
      %p195 = scmp.ne.s32.totalorder %s187, %s190
      %p196 = scmp.eq.s32.totalorder %s22, 0
      %p197 = por %p195, %p196
      %p198 = scmp.ne.s32.totalorder %s187, %s190
      %p199 = scmp.eq.s32.totalorder %s27, 5
      %p200 = por %p198, %p199
      %p201 = scmp.ne.s32.totalorder %s190, %s191
      %p202 = scmp.eq.s32.totalorder %s27, 0
      %p203 = por %p201, %p202
      %p204 = scmp.ne.s32.totalorder %s190, %s191
      %p205 = scmp.eq.s32.totalorder %s28, 5
      %p206 = por %p204, %p205
      %p208 = scmp.ne.s32.totalorder %s191, %s207
      %p209 = scmp.eq.s32.totalorder %s28, 0
      %p210 = por %p208, %p209
      %p211 = scmp.le.s32.totalorder 1, %s22
      %p212 = scmp.lt.s32.totalorder %s22, 7
      %p213 = pnand %p211, %p212
      %p214 = pneg %p213
      // Predicated region
      $region9: #{tpu_custom_call.1} parent=5 // pred_check
        _
      $region10: #{tpu_custom_call.1} parent=5 // pred_check_branch
        %216 = sbr.rel (%p213) target = $region12
      $region11: #{tpu_custom_call.1} parent=5 // pred_region
        %s217 = ssub.s32 %s22, 1
        // Predicated region
        $region13: #{tpu_custom_call.1} parent=11 // pred_check
          %p218 = pneg %p135
        $region14: #{tpu_custom_call.1} parent=11 // pred_check_branch
          %220 = sbr.rel (%p218) target = $region16
        $region15: #{tpu_custom_call.1} parent=11 // pred_region
          %222 = vsyncadd [#allocation10], 0
          %s223 = sshll.u32 %s3, 4
          %s224 = int_to_ptr.hbm [resolvable:$true] %s223
          %s225 = sshll.u32 [#allocation9], 4
          %s226 = int_to_ptr.vmem [resolvable:$true] %s225
          %231 = dma.hbm_to_vmem [thread:$0]  %s224, 2048, %s226, [#allocation10], 128, 128, 8
        $region16: #{tpu_custom_call.1} parent=11 // pred_fallthru
          _
        // Predicated region
        $region17: #{tpu_custom_call.1} parent=11 // pred_check
          %p232 = pneg %p156
        $region18: #{tpu_custom_call.1} parent=11 // pred_check_branch
          %234 = sbr.rel (%p232) target = $region20
        $region19: #{tpu_custom_call.1} parent=11 // pred_region
          %236 = vsyncadd [#allocation10], 0
          %s237 = sshll.u32 %s4, 4
          %s238 = int_to_ptr.hbm [resolvable:$true] %s237
          %s239 = sshll.u32 [#allocation11], 4
          %s240 = int_to_ptr.vmem [resolvable:$true] %s239
          %245 = dma.hbm_to_vmem [thread:$0]  %s238, 2048, %s240, [#allocation10], 128, 128, 8
        $region20: #{tpu_custom_call.1} parent=11 // pred_fallthru
          _
        // Predicated region
        $region21: #{tpu_custom_call.1} parent=11 // pred_check
          %p246 = pneg %p177
        $region22: #{tpu_custom_call.1} parent=11 // pred_check_branch
          %248 = sbr.rel (%p246) target = $region24
        $region23: #{tpu_custom_call.1} parent=11 // pred_region
          _
        $region24: #{tpu_custom_call.1} parent=11 // pred_fallthru
          _
      $region12: #{tpu_custom_call.1} parent=5 // pred_fallthru
        _
      %p249 = scmp.lt.s32.totalorder %s22, 6
      // Predicated region
      $region25: #{tpu_custom_call.1} parent=5 // pred_check
        %p250 = pneg %p249
      $region26: #{tpu_custom_call.1} parent=5 // pred_check_branch
        %252 = sbr.rel (%p250) target = $region28
      $region27: #{tpu_custom_call.1} parent=5 // pred_region
        // Predicated region
        $region29: #{tpu_custom_call.1} parent=27 // pred_check
          %p253 = pneg %p56
        $region30: #{tpu_custom_call.1} parent=27 // pred_check_branch
          %255 = sbr.rel (%p253) target = $region32
        $region31: #{tpu_custom_call.1} parent=27 // pred_region
          %s256 = sand.u32 %s46, 1
          %s257 = scalar_lea.sflag [#allocation4], %s256
          %s258 = sand.u32 %s46, 1
          %s259 = smul.addr %s258, 64
          %s260 = scalar_lea.vmem [#allocation3], %s259
          %s261 = smul.u32 8, %s29
          %263 = vsyncadd %s257, 0
          %s264 = smul.addr %s261, 2
          %s265 = sadd.s32 %s30, %s264
          %s266 = smul.addr %s265, 8
          %s267 = scalar_lea.hbm %s0, %s266
          %s268 = sshll.u32 %s267, 4
          %s269 = int_to_ptr.hbm [resolvable:$true] %s268
          %s270 = sshll.u32 %s260, 4
          %s271 = int_to_ptr.vmem [resolvable:$true] %s270
          %276 = dma.hbm_to_vmem [thread:$0]  %s269, 1024, %s271, %s257, 256, 128, 8
        $region32: #{tpu_custom_call.1} parent=27 // pred_fallthru
          _
        // Predicated region
        $region33: #{tpu_custom_call.1} parent=27 // pred_check
          %p277 = pneg %p82
        $region34: #{tpu_custom_call.1} parent=27 // pred_check_branch
          %279 = sbr.rel (%p277) target = $region36
        $region35: #{tpu_custom_call.1} parent=27 // pred_region
          %s280 = sand.u32 %s22, 1
          %s281 = scalar_lea.sflag [#allocation7], %s280
          %s282 = sand.u32 %s72, 1
          %s283 = smul.addr %s282, 128
          %s284 = scalar_lea.vmem [#allocation6], %s283
          %s285 = smul.u32 16, %s30
          %287 = vsyncadd %s281, 0
          %s288 = smul.addr %s285, 8
          %s289 = scalar_lea.hbm %s1, %s288
          %s290 = sshll.u32 %s289, 4
          %s291 = int_to_ptr.hbm [resolvable:$true] %s290
          %s292 = sshll.u32 %s284, 4
          %s293 = int_to_ptr.vmem [resolvable:$true] %s292
          %298 = dma.hbm_to_vmem [thread:$0]  %s291, 2048, %s293, %s281, 128, 128, 8
        $region36: #{tpu_custom_call.1} parent=27 // pred_fallthru
          _
        // Predicated region
        $region37: #{tpu_custom_call.1} parent=27 // pred_check
          %p299 = pneg %p108
        $region38: #{tpu_custom_call.1} parent=27 // pred_check_branch
          %301 = sbr.rel (%p299) target = $region40
        $region39: #{tpu_custom_call.1} parent=27 // pred_region
          %s302 = sand.u32 %s22, 1
          %s303 = scalar_lea.sflag [#allocation7], %s302
          %s304 = sand.u32 %s98, 1
          %s305 = smul.addr %s304, 64
          %s306 = scalar_lea.vmem [#allocation8], %s305
          %s307 = smul.u32 8, %s29
          %309 = vsyncadd %s303, 0
          %s310 = smul.addr %s307, 8
          %s311 = scalar_lea.hbm %s2, %s310
          %s312 = sshll.u32 %s311, 4
          %s313 = int_to_ptr.hbm [resolvable:$true] %s312
          %s314 = sshll.u32 %s306, 4
          %s315 = int_to_ptr.vmem [resolvable:$true] %s314
          %320 = dma.hbm_to_vmem [thread:$0]  %s313, 1024, %s315, %s303, 128, 128, 8
        $region40: #{tpu_custom_call.1} parent=27 // pred_fallthru
          _
      $region28: #{tpu_custom_call.1} parent=5 // pred_fallthru
        _
      %p321 = scmp.le.s32.totalorder 1, %s22
      %p322 = scmp.lt.s32.totalorder %s22, 7
      %p323 = pnand %p321, %p322
      %p324 = pneg %p323
      // Predicated region
      $region41: #{tpu_custom_call.1} parent=5 // pred_check
        _
      $region42: #{tpu_custom_call.1} parent=5 // pred_check_branch
        %326 = sbr.rel (%p323) target = $region44
      $region43: #{tpu_custom_call.1} parent=5 // pred_region
        %s327 = ssub.s32 %s22, 1
        %s328 = sand.u32 %s49, 1
        %s329 = scalar_lea.sflag [#allocation4], %s328
        %s330 = sand.u32 %s49, 1
        %s331 = smul.addr %s330, 64
        %s332 = scalar_lea.vmem [#allocation3], %s331
        // Predicated region
        $region45: #{tpu_custom_call.1} parent=43 // pred_check
          %p333 = pneg %p62
        $region46: #{tpu_custom_call.1} parent=43 // pred_check_branch
          %335 = sbr.rel (%p333) target = $region48
        $region47: #{tpu_custom_call.1} parent=43 // pred_region
          %337 = dma.done %s329, 1024
        $region48: #{tpu_custom_call.1} parent=43 // pred_fallthru
          _
        %s338 = sand.u32 %s27, 1
        %s339 = scalar_lea.sflag [#allocation7], %s338
        %s340 = sand.u32 %s75, 1
        %s341 = smul.addr %s340, 128
        %s342 = scalar_lea.vmem [#allocation6], %s341
        // Predicated region
        $region49: #{tpu_custom_call.1} parent=43 // pred_check
          %p343 = pneg %p88
        $region50: #{tpu_custom_call.1} parent=43 // pred_check_branch
          %345 = sbr.rel (%p343) target = $region52
        $region51: #{tpu_custom_call.1} parent=43 // pred_region
          %347 = dma.done %s339, 2048
        $region52: #{tpu_custom_call.1} parent=43 // pred_fallthru
          _
        %s348 = sand.u32 %s27, 1
        %s349 = scalar_lea.sflag [#allocation7], %s348
        %s350 = sand.u32 %s101, 1
        %s351 = smul.addr %s350, 64
        %s352 = scalar_lea.vmem [#allocation8], %s351
        // Predicated region
        $region53: #{tpu_custom_call.1} parent=43 // pred_check
          %p353 = pneg %p114
        $region54: #{tpu_custom_call.1} parent=43 // pred_check_branch
          %355 = sbr.rel (%p353) target = $region56
        $region55: #{tpu_custom_call.1} parent=43 // pred_region
          %357 = dma.done %s349, 1024
        $region56: #{tpu_custom_call.1} parent=43 // pred_fallthru
          _
        // Predicated region
        $region57: #{tpu_custom_call.1} parent=43 // pred_check
          %p358 = pneg %p135
        $region58: #{tpu_custom_call.1} parent=43 // pred_check_branch
          %360 = sbr.rel (%p358) target = $region60
        $region59: #{tpu_custom_call.1} parent=43 // pred_region
          %362 = dma.done [#allocation10], 2048
        $region60: #{tpu_custom_call.1} parent=43 // pred_fallthru
          _
        // Predicated region
        $region61: #{tpu_custom_call.1} parent=43 // pred_check
          %p363 = pneg %p156
        $region62: #{tpu_custom_call.1} parent=43 // pred_check_branch
          %365 = sbr.rel (%p363) target = $region64
        $region63: #{tpu_custom_call.1} parent=43 // pred_region
          %367 = dma.done [#allocation10], 2048
        $region64: #{tpu_custom_call.1} parent=43 // pred_fallthru
          _
        %s368 = sand.u32 %s49, 1
        %s369 = scalar_lea.sflag [#allocation4], %s368
        %s370 = sand.u32 %s49, 1
        %s371 = smul.addr %s370, 64
        %s372 = scalar_lea.vmem [#allocation3], %s371
        %p373 = pneg %p62
        %p374 = pneg %p59
        %s375 = sand.u32 %s27, 1
        %s376 = scalar_lea.sflag [#allocation7], %s375
        %s377 = sand.u32 %s75, 1
        %s378 = smul.addr %s377, 128
        %s379 = scalar_lea.vmem [#allocation6], %s378
        %p380 = pneg %p88
        %p381 = pneg %p85
        %s382 = sand.u32 %s27, 1
        %s383 = scalar_lea.sflag [#allocation7], %s382
        %s384 = sand.u32 %s101, 1
        %s385 = smul.addr %s384, 64
        %s386 = scalar_lea.vmem [#allocation8], %s385
        %p387 = pneg %p114
        %p388 = pneg %p111
        %p389 = pneg %p135
        %p390 = pneg %p132
        %p391 = pneg %p156
        %p392 = pneg %p153
        %p393 = pneg %p177
        %p394 = pneg %p174
        %p395 = pneg %p203
        %p396 = pneg %p200
        %s397 = sand.u32 %s190, 1
        %s398 = scalar_lea.sflag [#allocation5], %s397
        %s399 = sand.u32 %s190, 1
        %s400 = smul.addr %s399, 64
        %s401 = scalar_lea.vmem [#allocation12], %s400
        %s402 = smul.u32 8, %s31
        %s403 = smul.u32 16, %s32
        %s404 = smul.u32 8, %s31
        %s405 = smul.u32 8, %s31
        %p406 = scmp.eq.s32.totalorder %s32, 0
        // Predicated region
        $region65: #{tpu_custom_call.1} parent=43 // pred_check
          %p407 = pneg %p406
        $region66: #{tpu_custom_call.1} parent=43 // pred_check_branch
          %409 = sbr.rel (%p407) target = $region68
        $region67: #{tpu_custom_call.1} parent=43 // pred_region
          %v410 = vld [vmem:[%s352] sm:$0xff]
          %v411 = vld [vmem:[%s352 + $0x8] sm:$0xff]
          %v412 = vld [vmem:[%s352 + $0x10] sm:$0xff]
          %v413 = vld [vmem:[%s352 + $0x18] sm:$0xff]
          %v414 = vld [vmem:[%s352 + $0x20] sm:$0xff]
          %v415 = vld [vmem:[%s352 + $0x28] sm:$0xff]
          %v416 = vld [vmem:[%s352 + $0x30] sm:$0xff]
          %v417 = vld [vmem:[%s352 + $0x38] sm:$0xff]
          %v418 = vld [vmem:[#allocation11] sm:$0xff]
          %v419 = vld [vmem:[#allocation11 + $0x8] sm:$0xff]
          %v420 = vld [vmem:[#allocation11 + $0x10] sm:$0xff]
          %v421 = vld [vmem:[#allocation11 + $0x18] sm:$0xff]
          %v422 = vld [vmem:[#allocation11 + $0x20] sm:$0xff]
          %v423 = vld [vmem:[#allocation11 + $0x28] sm:$0xff]
          %v424 = vld [vmem:[#allocation11 + $0x30] sm:$0xff]
          %v425 = vld [vmem:[#allocation11 + $0x38] sm:$0xff]
          %v426 = vld [vmem:[#allocation11 + $0x40] sm:$0xff]
          %v427 = vld [vmem:[#allocation11 + $0x48] sm:$0xff]
          %v428 = vld [vmem:[#allocation11 + $0x50] sm:$0xff]
          %v429 = vld [vmem:[#allocation11 + $0x58] sm:$0xff]
          %v430 = vld [vmem:[#allocation11 + $0x60] sm:$0xff]
          %v431 = vld [vmem:[#allocation11 + $0x68] sm:$0xff]
          %v432 = vld [vmem:[#allocation11 + $0x70] sm:$0xff]
          %v433 = vld [vmem:[#allocation11 + $0x78] sm:$0xff]
          %v434 = vld [vmem:[%s5] sm:$0x1]
          %v436 = vperm.slane %v434, 0
          %438 = vmatpush.msra.mxu0 %v433
          %439 = vmatpush.msra.mxu0 %v432
          %440 = vmatpush.msra.mxu0 %v431
          %441 = vmatpush.msra.mxu0 %v430
          %442 = vmatpush.msra.mxu0 %v429
          %443 = vmatpush.msra.mxu0 %v428
          %444 = vmatpush.msra.mxu0 %v427
          %445 = vmatpush.msra.mxu0 %v426
          %446 = vmatpush.msra.mxu0 %v425
          %447 = vmatpush.msra.mxu0 %v424
          %448 = vmatpush.msra.mxu0 %v423
          %449 = vmatpush.msra.mxu0 %v422
          %450 = vmatpush.msra.mxu0 %v421
          %451 = vmatpush.msra.mxu0 %v420
          %452 = vmatpush.msra.mxu0 %v419
          %453 = vmatpush.msra.mxu0 %v418
          %454 = vmatmul.f32.gmra.mxu0 %v410
          %v455 = vpop.f32.mrf.mxu0
          %v456 = vadd.f32 %v436, %v455
          %457 = vmatmul.f32.gmra.mxu0 %v411
          %v458 = vpop.f32.mrf.mxu0
          %v459 = vadd.f32 %v436, %v458
          %460 = vmatmul.f32.gmra.mxu0 %v412
          %v461 = vpop.f32.mrf.mxu0
          %v462 = vadd.f32 %v436, %v461
          %463 = vmatmul.f32.gmra.mxu0 %v413
          %v464 = vpop.f32.mrf.mxu0
          %v465 = vadd.f32 %v436, %v464
          %466 = vmatmul.f32.gmra.mxu0 %v414
          %v467 = vpop.f32.mrf.mxu0
          %v468 = vadd.f32 %v436, %v467
          %469 = vmatmul.f32.gmra.mxu0 %v415
          %v470 = vpop.f32.mrf.mxu0
          %v471 = vadd.f32 %v436, %v470
          %472 = vmatmul.f32.gmra.mxu0 %v416
          %v473 = vpop.f32.mrf.mxu0
          %v474 = vadd.f32 %v436, %v473
          %475 = vmatmul.f32.gmra.mxu0 %v417
          %v476 = vpop.f32.mrf.mxu0
          %v477 = vadd.f32 %v436, %v476
          %478 = vdwg.mxu0
          %479 = vst [vmem:[#allocation2] sm:$0xff] %v456
          %480 = vst [vmem:[#allocation2 + $0x8] sm:$0xff] %v459
          %481 = vst [vmem:[#allocation2 + $0x10] sm:$0xff] %v462
          %482 = vst [vmem:[#allocation2 + $0x18] sm:$0xff] %v465
          %483 = vst [vmem:[#allocation2 + $0x20] sm:$0xff] %v468
          %484 = vst [vmem:[#allocation2 + $0x28] sm:$0xff] %v471
          %485 = vst [vmem:[#allocation2 + $0x30] sm:$0xff] %v474
          %486 = vst [vmem:[#allocation2 + $0x38] sm:$0xff] %v477
        $region68: #{tpu_custom_call.1} parent=43 // pred_fallthru
          _
        %v487 = vld [vmem:[%s342] sm:$0xff]
        %v488 = vld [vmem:[%s342 + $0x8] sm:$0xff]
        %v489 = vld [vmem:[%s342 + $0x10] sm:$0xff]
        %v490 = vld [vmem:[%s342 + $0x18] sm:$0xff]
        %v491 = vld [vmem:[%s342 + $0x20] sm:$0xff]
        %v492 = vld [vmem:[%s342 + $0x28] sm:$0xff]
        %v493 = vld [vmem:[%s342 + $0x30] sm:$0xff]
        %v494 = vld [vmem:[%s342 + $0x38] sm:$0xff]
        %v495 = vld [vmem:[%s342 + $0x40] sm:$0xff]
        %v496 = vld [vmem:[%s342 + $0x48] sm:$0xff]
        %v497 = vld [vmem:[%s342 + $0x50] sm:$0xff]
        %v498 = vld [vmem:[%s342 + $0x58] sm:$0xff]
        %v499 = vld [vmem:[%s342 + $0x60] sm:$0xff]
        %v500 = vld [vmem:[%s342 + $0x68] sm:$0xff]
        %v501 = vld [vmem:[%s342 + $0x70] sm:$0xff]
        %v502 = vld [vmem:[%s342 + $0x78] sm:$0xff]
        %v503 = vld [vmem:[#allocation9] sm:$0xff]
        %v504 = vld [vmem:[#allocation9 + $0x8] sm:$0xff]
        %v505 = vld [vmem:[#allocation9 + $0x10] sm:$0xff]
        %v506 = vld [vmem:[#allocation9 + $0x18] sm:$0xff]
        %v507 = vld [vmem:[#allocation9 + $0x20] sm:$0xff]
        %v508 = vld [vmem:[#allocation9 + $0x28] sm:$0xff]
        %v509 = vld [vmem:[#allocation9 + $0x30] sm:$0xff]
        %v510 = vld [vmem:[#allocation9 + $0x38] sm:$0xff]
        %v511 = vld [vmem:[#allocation9 + $0x40] sm:$0xff]
        %v512 = vld [vmem:[#allocation9 + $0x48] sm:$0xff]
        %v513 = vld [vmem:[#allocation9 + $0x50] sm:$0xff]
        %v514 = vld [vmem:[#allocation9 + $0x58] sm:$0xff]
        %v515 = vld [vmem:[#allocation9 + $0x60] sm:$0xff]
        %v516 = vld [vmem:[#allocation9 + $0x68] sm:$0xff]
        %v517 = vld [vmem:[#allocation9 + $0x70] sm:$0xff]
        %v518 = vld [vmem:[#allocation9 + $0x78] sm:$0xff]
        %519 = vmatpush.msra.mxu0 %v518
        %520 = vmatpush.msra.mxu0 %v517
        %521 = vmatpush.msra.mxu0 %v516
        %522 = vmatpush.msra.mxu0 %v515
        %523 = vmatpush.msra.mxu0 %v514
        %524 = vmatpush.msra.mxu0 %v513
        %525 = vmatpush.msra.mxu0 %v512
        %526 = vmatpush.msra.mxu0 %v511
        %527 = vmatpush.msra.mxu0 %v510
        %528 = vmatpush.msra.mxu0 %v509
        %529 = vmatpush.msra.mxu0 %v508
        %530 = vmatpush.msra.mxu0 %v507
        %531 = vmatpush.msra.mxu0 %v506
        %532 = vmatpush.msra.mxu0 %v505
        %533 = vmatpush.msra.mxu0 %v504
        %534 = vmatpush.msra.mxu0 %v503
        %535 = vmatmul.f32.gmra.mxu0 %v487
        %v536 = vpop.f32.mrf.mxu0
        %v537 = vadd.f32 0.0, %v536
        %538 = vmatmul.f32.gmra.mxu0 %v488
        %v539 = vpop.f32.mrf.mxu0
        %v540 = vadd.f32 0.0, %v539
        %541 = vmatmul.f32.gmra.mxu0 %v489
        %v542 = vpop.f32.mrf.mxu0
        %v543 = vadd.f32 0.0, %v542
        %544 = vmatmul.f32.gmra.mxu0 %v490
        %v545 = vpop.f32.mrf.mxu0
        %v546 = vadd.f32 0.0, %v545
        %547 = vmatmul.f32.gmra.mxu0 %v491
        %v548 = vpop.f32.mrf.mxu0
        %v549 = vadd.f32 0.0, %v548
        %550 = vmatmul.f32.gmra.mxu0 %v492
        %v551 = vpop.f32.mrf.mxu0
        %v552 = vadd.f32 0.0, %v551
        %553 = vmatmul.f32.gmra.mxu0 %v493
        %v554 = vpop.f32.mrf.mxu0
        %v555 = vadd.f32 0.0, %v554
        %556 = vmatmul.f32.gmra.mxu0 %v494
        %v557 = vpop.f32.mrf.mxu0
        %v558 = vadd.f32 0.0, %v557
        %559 = vmatmul.f32.gmra.mxu0 %v495
        %v560 = vpop.f32.mrf.mxu0
        %v561 = vadd.f32 0.0, %v560
        %562 = vmatmul.f32.gmra.mxu0 %v496
        %v563 = vpop.f32.mrf.mxu0
        %v564 = vadd.f32 0.0, %v563
        %565 = vmatmul.f32.gmra.mxu0 %v497
        %v566 = vpop.f32.mrf.mxu0
        %v567 = vadd.f32 0.0, %v566
        %568 = vmatmul.f32.gmra.mxu0 %v498
        %v569 = vpop.f32.mrf.mxu0
        %v570 = vadd.f32 0.0, %v569
        %571 = vmatmul.f32.gmra.mxu0 %v499
        %v572 = vpop.f32.mrf.mxu0
        %v573 = vadd.f32 0.0, %v572
        %574 = vmatmul.f32.gmra.mxu0 %v500
        %v575 = vpop.f32.mrf.mxu0
        %v576 = vadd.f32 0.0, %v575
        %577 = vmatmul.f32.gmra.mxu0 %v501
        %v578 = vpop.f32.mrf.mxu0
        %v579 = vadd.f32 0.0, %v578
        %580 = vmatmul.f32.gmra.mxu0 %v502
        %v581 = vpop.f32.mrf.mxu0
        %v582 = vadd.f32 0.0, %v581
        %583 = vdwg.mxu0
        %v584 = vld [vmem:[#allocation2] sm:$0xff]
        %v585 = vld [vmem:[#allocation2 + $0x8] sm:$0xff]
        %v586 = vld [vmem:[#allocation2 + $0x10] sm:$0xff]
        %v587 = vld [vmem:[#allocation2 + $0x18] sm:$0xff]
        %v588 = vld [vmem:[#allocation2 + $0x20] sm:$0xff]
        %v589 = vld [vmem:[#allocation2 + $0x28] sm:$0xff]
        %v590 = vld [vmem:[#allocation2 + $0x30] sm:$0xff]
        %v591 = vld [vmem:[#allocation2 + $0x38] sm:$0xff]
        %v592 = vld [vmem:[%s332] sm:$0xff]
        %v593 = vld [vmem:[%s332 + $0x8] sm:$0xff]
        %v594 = vld [vmem:[%s332 + $0x10] sm:$0xff]
        %v595 = vld [vmem:[%s332 + $0x18] sm:$0xff]
        %v596 = vld [vmem:[%s332 + $0x20] sm:$0xff]
        %v597 = vld [vmem:[%s332 + $0x28] sm:$0xff]
        %v598 = vld [vmem:[%s332 + $0x30] sm:$0xff]
        %v599 = vld [vmem:[%s332 + $0x38] sm:$0xff]
        %600 = vmatpush.msra.mxu0 %v582
        %601 = vmatpush.msra.mxu0 %v579
        %602 = vmatpush.msra.mxu0 %v576
        %603 = vmatpush.msra.mxu0 %v573
        %604 = vmatpush.msra.mxu0 %v570
        %605 = vmatpush.msra.mxu0 %v567
        %606 = vmatpush.msra.mxu0 %v564
        %607 = vmatpush.msra.mxu0 %v561
        %608 = vmatpush.msra.mxu0 %v558
        %609 = vmatpush.msra.mxu0 %v555
        %610 = vmatpush.msra.mxu0 %v552
        %611 = vmatpush.msra.mxu0 %v549
        %612 = vmatpush.msra.mxu0 %v546
        %613 = vmatpush.msra.mxu0 %v543
        %614 = vmatpush.msra.mxu0 %v540
        %615 = vmatpush.msra.mxu0 %v537
        %616 = vmatmul.f32.gmra.mxu0 %v592
        %v617 = vpop.f32.mrf.mxu0
        %v618 = vadd.f32 0.0, %v617
        %619 = vmatmul.f32.gmra.mxu0 %v593
        %v620 = vpop.f32.mrf.mxu0
        %v621 = vadd.f32 0.0, %v620
        %622 = vmatmul.f32.gmra.mxu0 %v594
        %v623 = vpop.f32.mrf.mxu0
        %v624 = vadd.f32 0.0, %v623
        %625 = vmatmul.f32.gmra.mxu0 %v595
        %v626 = vpop.f32.mrf.mxu0
        %v627 = vadd.f32 0.0, %v626
        %628 = vmatmul.f32.gmra.mxu0 %v596
        %v629 = vpop.f32.mrf.mxu0
        %v630 = vadd.f32 0.0, %v629
        %631 = vmatmul.f32.gmra.mxu0 %v597
        %v632 = vpop.f32.mrf.mxu0
        %v633 = vadd.f32 0.0, %v632
        %634 = vmatmul.f32.gmra.mxu0 %v598
        %v635 = vpop.f32.mrf.mxu0
        %v636 = vadd.f32 0.0, %v635
        %637 = vmatmul.f32.gmra.mxu0 %v599
        %v638 = vpop.f32.mrf.mxu0
        %v639 = vadd.f32 0.0, %v638
        %640 = vdwg.mxu0
        %v641 = vadd.f32 %v584, %v618
        %v642 = vadd.f32 %v585, %v621
        %v643 = vadd.f32 %v586, %v624
        %v644 = vadd.f32 %v587, %v627
        %v645 = vadd.f32 %v588, %v630
        %v646 = vadd.f32 %v589, %v633
        %v647 = vadd.f32 %v590, %v636
        %v648 = vadd.f32 %v591, %v639
        %649 = vst [vmem:[#allocation2] sm:$0xff] %v641
        %650 = vst [vmem:[#allocation2 + $0x8] sm:$0xff] %v642
        %651 = vst [vmem:[#allocation2 + $0x10] sm:$0xff] %v643
        %652 = vst [vmem:[#allocation2 + $0x18] sm:$0xff] %v644
        %653 = vst [vmem:[#allocation2 + $0x20] sm:$0xff] %v645
        %654 = vst [vmem:[#allocation2 + $0x28] sm:$0xff] %v646
        %655 = vst [vmem:[#allocation2 + $0x30] sm:$0xff] %v647
        %656 = vst [vmem:[#allocation2 + $0x38] sm:$0xff] %v648
        %p657 = scmp.eq.s32.totalorder %s32, 1
        // Predicated region
        $region69: #{tpu_custom_call.1} parent=43 // pred_check
          %p658 = pneg %p657
        $region70: #{tpu_custom_call.1} parent=43 // pred_check_branch
          %660 = sbr.rel (%p658) target = $region72
        $region71: #{tpu_custom_call.1} parent=43 // pred_region
          %v661 = vld [vmem:[#allocation2] sm:$0xff]
          %v662 = vld [vmem:[#allocation2 + $0x8] sm:$0xff]
          %v663 = vld [vmem:[#allocation2 + $0x10] sm:$0xff]
          %v664 = vld [vmem:[#allocation2 + $0x18] sm:$0xff]
          %v665 = vld [vmem:[#allocation2 + $0x20] sm:$0xff]
          %v666 = vld [vmem:[#allocation2 + $0x28] sm:$0xff]
          %v667 = vld [vmem:[#allocation2 + $0x30] sm:$0xff]
          %v668 = vld [vmem:[#allocation2 + $0x38] sm:$0xff]
          %669 = vst [vmem:[%s401] sm:$0xff] %v661
          %670 = vst [vmem:[%s401 + $0x8] sm:$0xff] %v662
          %671 = vst [vmem:[%s401 + $0x10] sm:$0xff] %v663
          %672 = vst [vmem:[%s401 + $0x18] sm:$0xff] %v664
          %673 = vst [vmem:[%s401 + $0x20] sm:$0xff] %v665
          %674 = vst [vmem:[%s401 + $0x28] sm:$0xff] %v666
          %675 = vst [vmem:[%s401 + $0x30] sm:$0xff] %v667
          %676 = vst [vmem:[%s401 + $0x38] sm:$0xff] %v668
        $region72: #{tpu_custom_call.1} parent=43 // pred_fallthru
          _
        %s677 = sand.u32 %s190, 1
        %s678 = scalar_lea.sflag [#allocation5], %s677
        %s679 = sand.u32 %s190, 1
        %s680 = smul.addr %s679, 64
        %s681 = scalar_lea.vmem [#allocation12], %s680
        // Predicated region
        $region73: #{tpu_custom_call.1} parent=43 // pred_check
          %p682 = pneg %p200
        $region74: #{tpu_custom_call.1} parent=43 // pred_check_branch
          %684 = sbr.rel (%p682) target = $region76
        $region75: #{tpu_custom_call.1} parent=43 // pred_region
          %s685 = smul.u32 8, %s31
          %687 = vsyncadd %s678, 0
          %s688 = smul.addr %s685, 8
          %s689 = scalar_lea.hbm %s6, %s688
          %s690 = sshll.u32 %s681, 4
          %s691 = int_to_ptr.vmem [resolvable:$true] %s690
          %s692 = sshll.u32 %s689, 4
          %s693 = int_to_ptr.hbm [resolvable:$true] %s692
          %698 = dma.vmem_to_hbm [thread:$0]  %s691, 1024, %s693, %s678, 128, 128, 8
        $region76: #{tpu_custom_call.1} parent=43 // pred_fallthru
          _
      $region44: #{tpu_custom_call.1} parent=5 // pred_fallthru
        _
      %p699 = scmp.le.s32.totalorder 2, %s22
      // Predicated region
      $region77: #{tpu_custom_call.1} parent=5 // pred_check
        %p700 = pneg %p699
      $region78: #{tpu_custom_call.1} parent=5 // pred_check_branch
        %702 = sbr.rel (%p700) target = $region80
      $region79: #{tpu_custom_call.1} parent=5 // pred_region
        %s703 = ssub.s32 %s22, 2
        // Predicated region
        $region81: #{tpu_custom_call.1} parent=79 // pred_check
          %p704 = pneg %p206
        $region82: #{tpu_custom_call.1} parent=79 // pred_check_branch
          %706 = sbr.rel (%p704) target = $region84
        $region83: #{tpu_custom_call.1} parent=79 // pred_region
          %s707 = sand.u32 %s191, 1
          %s708 = scalar_lea.sflag [#allocation5], %s707
          %s709 = sand.u32 %s191, 1
          %s710 = smul.addr %s709, 64
          %s711 = scalar_lea.vmem [#allocation12], %s710
          %713 = dma.done %s708, 1024
        $region84: #{tpu_custom_call.1} parent=79 // pred_fallthru
          _
      $region80: #{tpu_custom_call.1} parent=5 // pred_fallthru
        _
    $region6: #{tpu_custom_call.1} parent=1 // loop_footer
      %s26 = sadd.s32 1, %s22
    $region7: #{tpu_custom_call.1} parent=1 // loop_footer_branch
      %21 = sbr.rel target = $region3
    $region8: #{tpu_custom_call.1} parent=1 // loop_exit
      _
    %714 = vsyncpa [#allocation4], 1
    %s715 = scalar_lea.sflag [#allocation4], 1
    %716 = vsyncpa %s715, 1
    %717 = vsyncpa [#allocation7], 1
    %s718 = scalar_lea.sflag [#allocation7], 1
    %719 = vsyncpa %s718, 1
    %720 = vsyncpa [#allocation10], 1
    %721 = vsyncpa [#allocation5], 1
    %s722 = scalar_lea.sflag [#allocation5], 1
    %723 = vsyncpa %s722, 1

</llo_original>
